<compile_context>
chip_gen: v7x
topology: tpu7x:2x2x1
jax: 0.10.0
libtpu: 0.0.40
codegen_flags: <defaults>
</compile_context>

<pallas_src>
import functools

import jax
import jax.numpy as jnp
from jax import lax
from jax.experimental import pallas as pl
from jax.experimental.pallas import tpu as pltpu


_VMEM_LIMIT_BYTES = 32 * 1024 * 1024      # safe on v5e/v6e/v7x scoped VMEM
_TILE_BUDGET_BYTES = 4 * 1024 * 1024      # per double-buffered streamed-input tile


def _round_up(x, m):
    return ((x + m - 1) // m) * m


def _pick_tile_m(m, row_elems, bytes_per_elem=4):
    """Largest row tile (multiple of 8) whose double-buffered tile fits the budget."""
    tm = _TILE_BUDGET_BYTES // max(1, 2 * row_elems * bytes_per_elem)
    tm = max(8, min(512, tm))
    tm = (tm // 8) * 8
    return min(tm, _round_up(m, 8))


# ----------------------------------------------------------------------------
# Pallas kernels
# ----------------------------------------------------------------------------
def _gemm_bias_act_kernel(x_ref, w_ref, b_ref, o_ref, *, act, negative_slope):
    # x: (TM, K), w: (K, N), b: (1, N), o: (TM, N)
    y = jnp.dot(x_ref[...], w_ref[...], preferred_element_type=jnp.float32)
    y = y + b_ref[...]
    if act == "relu":
        y = jnp.maximum(y, 0.0)
    elif act == "leaky_relu":
        y = jnp.where(y >= 0.0, y, negative_slope * y)
    o_ref[...] = y.astype(o_ref.dtype)


def _max4_kernel(a_ref, b_ref, c_ref, d_ref, o_ref):
    # elementwise max of the four 2x2-pool phases, channels lane-dense
    o_ref[...] = jnp.maximum(jnp.maximum(a_ref[...], b_ref[...]),
                             jnp.maximum(c_ref[...], d_ref[...]))


def _mlp_kernel(x_ref, w1_ref, b1_ref, w2_ref, b2_ref, w3_ref, b3_ref, o_ref):
    # Fused Linear(hidden,256)+ReLU -> Linear(256,128)+ReLU -> Linear(128,classes).
    h = jnp.dot(x_ref[...], w1_ref[...], preferred_element_type=jnp.float32) + b1_ref[...]
    h = jnp.maximum(h, 0.0)
    # TODO(synk): Dropout(0.5) is a no-op in eval/inference mode; training-time
    # stochastic dropout is not implemented here.
    h = jnp.dot(h, w2_ref[...], preferred_element_type=jnp.float32) + b2_ref[...]
    h = jnp.maximum(h, 0.0)
    y = jnp.dot(h, w3_ref[...], preferred_element_type=jnp.float32) + b3_ref[...]
    o_ref[...] = y.astype(o_ref.dtype)


# ----------------------------------------------------------------------------
# Pallas-backed ops
# ----------------------------------------------------------------------------
def matmul_bias_act(x, w, bias, *, act="none", negative_slope=0.01):
    """act(x @ w + bias) with a gridded Pallas GEMM.  x: (M, K), w: (K, N), bias: (N,)."""
    m, k = x.shape
    k2, n = w.shape
    assert k == k2
    tm = _pick_tile_m(m, k)
    m_pad = _round_up(m, tm)
    x = x.astype(jnp.float32)
    if m_pad != m:
        x = jnp.pad(x, ((0, m_pad - m), (0, 0)))

    kernel = functools.partial(_gemm_bias_act_kernel, act=act,
                               negative_slope=negative_slope)
    out = pl.pallas_call(
        kernel,
        out_shape=jax.ShapeDtypeStruct((m_pad, n), jnp.float32),
        grid=(pl.cdiv(m_pad, tm),),
        in_specs=[
            pl.BlockSpec((tm, k), lambda i: (i, 0)),     # streamed row tiles
            pl.BlockSpec((k, n), lambda i: (0, 0)),      # weights replicated
            pl.BlockSpec((1, n), lambda i: (0, 0)),      # bias replicated (lane-dense)
        ],
        out_specs=pl.BlockSpec((tm, n), lambda i: (i, 0)),
        compiler_params=pltpu.CompilerParams(
            dimension_semantics=("parallel",),
            vmem_limit_bytes=_VMEM_LIMIT_BYTES),
    )(x, w.astype(jnp.float32), bias.reshape(1, n).astype(jnp.float32))
    return out[:m]


def conv2d_lrelu(x, w_oihw, bias, *, stride, padding, negative_slope=0.01):
    """NHWC Conv2d + bias + LeakyReLU via im2col (wrapper) + Pallas GEMM (kernel)."""
    bsz, h, w, cin = x.shape
    cout, cin_w, kh, kw = w_oihw.shape
    assert cin == cin_w
    xp = jnp.pad(x, ((0, 0), (padding, padding), (padding, padding), (0, 0)))
    hp, wp = h + 2 * padding, w + 2 * padding
    ho = (hp - kh) // stride + 1
    wo = (wp - kw) // stride + 1
    # im2col: last-axis ordering (kh, kw, cin) — pure data movement
    cols = [xp[:, i:i + stride * ho:stride, j:j + stride * wo:stride, :]
            for i in range(kh) for j in range(kw)]
    patches = jnp.concatenate(cols, axis=-1).reshape(bsz * ho * wo, kh * kw * cin)
    # (O, I, KH, KW) -> (KH, KW, I, O) -> (KH*KW*I, O) to match the patch ordering
    w_mat = jnp.transpose(w_oihw, (2, 3, 1, 0)).reshape(kh * kw * cin, cout)
    y = matmul_bias_act(patches, w_mat, bias, act="leaky_relu",
                        negative_slope=negative_slope)
    return y.reshape(bsz, ho, wo, cout)


def maxpool2x2(x):
    """2x2, stride-2, floor-mode max pool on NHWC (matches torch MaxPool2d(2))."""
    bsz, h, w, c = x.shape
    ho, wo = h // 2, w // 2
    phases = [x[:, dh:2 * ho:2, dw:2 * wo:2, :] for dh in (0, 1) for dw in (0, 1)]
    m = bsz * ho * wo
    tm = _pick_tile_m(m, c)
    m_pad = _round_up(m, tm)

    def prep(t):
        t = t.reshape(m, c)
        if m_pad != m:
            t = jnp.pad(t, ((0, m_pad - m), (0, 0)))
        return t

    out = pl.pallas_call(
        _max4_kernel,
        out_shape=jax.ShapeDtypeStruct((m_pad, c), x.dtype),
        grid=(pl.cdiv(m_pad, tm),),
        in_specs=[pl.BlockSpec((tm, c), lambda i: (i, 0))] * 4,
        out_specs=pl.BlockSpec((tm, c), lambda i: (i, 0)),
        compiler_params=pltpu.CompilerParams(
            dimension_semantics=("parallel",),
            vmem_limit_bytes=_VMEM_LIMIT_BYTES),
    )(*map(prep, phases))
    return out[:m].reshape(bsz, ho, wo, c)


def mlp_head(flat, l1w, l1b, l2w, l2b, l3w, l3b):
    """Fused 3-layer MLP head in one Pallas kernel (weights in PyTorch (out,in) layout)."""
    m, d0 = flat.shape
    d1, d2, classes = l1w.shape[0], l2w.shape[0], l3w.shape[0]
    tm = _pick_tile_m(m, d0)
    m_pad = _round_up(m, tm)
    x = flat.astype(jnp.float32)
    if m_pad != m:
        x = jnp.pad(x, ((0, m_pad - m), (0, 0)))

    out = pl.pallas_call(
        _mlp_kernel,
        out_shape=jax.ShapeDtypeStruct((m_pad, classes), jnp.float32),
        grid=(pl.cdiv(m_pad, tm),),
        in_specs=[
            pl.BlockSpec((tm, d0), lambda i: (i, 0)),
            pl.BlockSpec((d0, d1), lambda i: (0, 0)),
            pl.BlockSpec((1, d1), lambda i: (0, 0)),
            pl.BlockSpec((d1, d2), lambda i: (0, 0)),
            pl.BlockSpec((1, d2), lambda i: (0, 0)),
            pl.BlockSpec((d2, classes), lambda i: (0, 0)),
            pl.BlockSpec((1, classes), lambda i: (0, 0)),
        ],
        out_specs=pl.BlockSpec((tm, classes), lambda i: (i, 0)),
        compiler_params=pltpu.CompilerParams(
            dimension_semantics=("parallel",),
            vmem_limit_bytes=_VMEM_LIMIT_BYTES),
    )(x,
      l1w.T.astype(jnp.float32), l1b.reshape(1, d1).astype(jnp.float32),
      l2w.T.astype(jnp.float32), l2b.reshape(1, d2).astype(jnp.float32),
      l3w.T.astype(jnp.float32), l3b.reshape(1, classes).astype(jnp.float32))
    return out[:m]


def cnnlight_forward(x_nchw, params):
    """Equivalent of CNNlight.forward (inference mode)."""
    (c1w, c1b), (c2w, c2b), (c3w, c3b), (l1w, l1b), (l2w, l2b), (l3w, l3b) = params
    x = jnp.transpose(x_nchw, (0, 2, 3, 1))          # NCHW -> NHWC (channels lane-dense)
    x = conv2d_lrelu(x, c1w, c1b, stride=2, padding=1)
    x = maxpool2x2(x)
    x = conv2d_lrelu(x, c2w, c2b, stride=1, padding=1)
    x = maxpool2x2(x)
    x = conv2d_lrelu(x, c3w, c3b, stride=1, padding=1)
    x = maxpool2x2(x)
    # match torch's x.view(B, -1) on NCHW: flatten in (C, H, W) order
    flat = jnp.transpose(x, (0, 3, 1, 2)).reshape(x.shape[0], -1)
    return mlp_head(flat, l1w, l1b, l2w, l2b, l3w, l3b)


# ----------------------------------------------------------------------------
# Pure-JAX reference (mirrors the PyTorch module exactly) + test
# ----------------------------------------------------------------------------
def _leaky(x, s=0.01):
    return jnp.where(x >= 0.0, x, s * x)


def _ref_maxpool_nchw(x):
    return lax.reduce_window(x, -jnp.inf, lax.max,
                             (1, 1, 2, 2), (1, 1, 2, 2), "VALID")


def reference_forward(x_nchw, params):
    (c1w, c1b), (c2w, c2b), (c3w, c3b), (l1w, l1b), (l2w, l2b), (l3w, l3b) = params
    dn = ("NCHW", "OIHW", "NCHW")
    y = lax.conv_general_dilated(x_nchw, c1w, (2, 2), [(1, 1), (1, 1)],
                                 dimension_numbers=dn)
    y = _ref_maxpool_nchw(_leaky(y + c1b[None, :, None, None]))
    y = lax.conv_general_dilated(y, c2w, (1, 1), [(1, 1), (1, 1)],
                                 dimension_numbers=dn)
    y = _ref_maxpool_nchw(_leaky(y + c2b[None, :, None, None]))
    y = lax.conv_general_dilated(y, c3w, (1, 1), [(1, 1), (1, 1)],
                                 dimension_numbers=dn)
    y = _ref_maxpool_nchw(_leaky(y + c3b[None, :, None, None]))
    f = y.reshape(y.shape[0], -1)
    h = jnp.maximum(f @ l1w.T + l1b, 0.0)
    h = jnp.maximum(h @ l2w.T + l2b, 0.0)
    return h @ l3w.T + l3b


if __name__ == "__main__":
    key = jax.random.PRNGKey(0)
    keys = jax.random.split(key, 13)

    # Small shapes: batch=2, 1 input channel, 21x33 spectrogram patch, 5 classes.
    # This input size yields a 128 x 2 x 2 feature map -> hidden_dim = 512
    # (the PyTorch module's hidden_dim table is just this quantity for its input sizes).
    B, H, W = 2, 21, 33
    classes = 5
    hidden_dim = 512

    x = jax.random.normal(keys[0], (B, 1, H, W), dtype=jnp.float32)

    def init_conv(kw_, kb_, cout, cin, kh, kw):
        w_ = jax.random.normal(kw_, (cout, cin, kh, kw), dtype=jnp.float32) * 0.05
        b_ = jax.random.normal(kb_, (cout,), dtype=jnp.float32) * 0.05
        return w_, b_

    def init_linear(kw_, kb_, dout, din):
        w_ = jax.random.normal(kw_, (dout, din), dtype=jnp.float32) * 0.05
        b_ = jax.random.normal(kb_, (dout,), dtype=jnp.float32) * 0.05
        return w_, b_

    c1 = init_conv(keys[1], keys[2], 64, 1, 7, 11)     # Conv2d(1, 64, (7, 11), stride=2, pad=1)
    c2 = init_conv(keys[3], keys[4], 128, 64, 3, 3)    # Conv2d(64, 128, 3, pad=1)
    c3 = init_conv(keys[5], keys[6], 128, 128, 1, 1)   # Conv2d(128, 128, 1, pad=1)
    l1 = init_linear(keys[7], keys[8], 256, hidden_dim)
    l2 = init_linear(keys[9], keys[10], 128, 256)
    l3 = init_linear(keys[11], keys[12], classes, 128)

    params = (c1, c2, c3, l1, l2, l3)

    out = cnnlight_forward(x, params)
    out = jax.block_until_ready(out)

    ref = reference_forward(x, params)
    assert out.shape == (B, classes), out.shape
    assert jnp.allclose(out, ref, atol=1e-3, rtol=1e-3), (out, ref)

    print("KERNEL_OK")
</pallas_src>

<mosaic_0001>
module attributes {stable_mosaic.version = 11 : i64} {
  func.func @_gemm_bias_act_kernel(%arg0: i32, %arg1: memref<240x77xf32, #tpu.memory_space<vmem>>, %arg2: memref<77x64xf32, #tpu.memory_space<vmem>>, %arg3: memref<1x64xf32, #tpu.memory_space<vmem>>, %arg4: memref<240x64xf32, #tpu.memory_space<vmem>>) attributes {dimension_semantics = [#tpu.dimension_semantics<parallel>], iteration_bounds = array<i64: 1>, scalar_prefetch = 0 : i64, scratch_operands = 0 : i64, tpu.core_type = #tpu.core_type<tc>, window_params = [{transform_indices = @transform_0, window_bounds = array<i64: 240, 77>}, {pipeline_mode = #tpu.pipeline_mode<synchronous>, transform_indices = @transform_1, window_bounds = array<i64: 77, 64>}, {pipeline_mode = #tpu.pipeline_mode<synchronous>, transform_indices = @transform_2, window_bounds = array<i64: 1, 64>}, {transform_indices = @transform_3, window_bounds = array<i64: 240, 64>}]} {
    %c0 = arith.constant 0 : index
    %c0_0 = arith.constant 0 : index
    %0 = vector.load %arg1[%c0, %c0_0] : memref<240x77xf32, #tpu.memory_space<vmem>>, vector<240x77xf32>
    %c0_1 = arith.constant 0 : index
    %c0_2 = arith.constant 0 : index
    %1 = vector.load %arg2[%c0_1, %c0_2] : memref<77x64xf32, #tpu.memory_space<vmem>>, vector<77x64xf32>
    %cst = arith.constant dense<0.000000e+00> : vector<240x64xf32>
    %2 = tpu.matmul %0, %1, %cst {dimension_numbers = #tpu.dot_dimension_numbers<[1], [0], [0], [1], [0, 0, 1, 1], [], []>} : vector<240x77xf32>, vector<77x64xf32>, vector<240x64xf32> -> vector<240x64xf32>
    %c0_3 = arith.constant 0 : index
    %c0_4 = arith.constant 0 : index
    %3 = vector.load %arg3[%c0_3, %c0_4] : memref<1x64xf32, #tpu.memory_space<vmem>>, vector<1x64xf32>
    %4 = vector.broadcast %3 : vector<1x64xf32> to vector<240x64xf32>
    %5 = arith.addf %2, %4 : vector<240x64xf32>
    %cst_5 = arith.constant 0.000000e+00 : f32
    %6 = vector.broadcast %cst_5 : f32 to vector<240x64xf32>
    %7 = arith.cmpf oge, %5, %6 : vector<240x64xf32>
    %cst_6 = arith.constant 0.00999999977 : f32
    %8 = vector.broadcast %cst_6 : f32 to vector<240x64xf32>
    %9 = arith.mulf %8, %5 : vector<240x64xf32>
    %10 = arith.select %7, %5, %9 : vector<240x64xi1>, vector<240x64xf32>
    %c0_7 = arith.constant 0 : index
    %c0_8 = arith.constant 0 : index
    %11 = vector.load %arg4[%c0_7, %c0_8] : memref<240x64xf32, #tpu.memory_space<vmem>>, vector<240x64xf32>
    tpu.vector_store %arg4[%c0_7, %c0_8], %10 {strides = array<i32>} : memref<240x64xf32, #tpu.memory_space<vmem>>, vector<240x64xf32>,
    return
  }
  func.func @transform_0(%arg0: i32) -> (i32, i32) {
    %c0_i32 = arith.constant 0 : i32
    %c0_i32_0 = arith.constant 0 : i32
    return %arg0, %c0_i32 : i32, i32
  }
  func.func @transform_1(%arg0: i32) -> (i32, i32) {
    %c0_i32 = arith.constant 0 : i32
    %c0_i32_0 = arith.constant 0 : i32
    %c0_i32_1 = arith.constant 0 : i32
    return %c0_i32, %c0_i32_0 : i32, i32
  }
  func.func @transform_2(%arg0: i32) -> (i32, i32) {
    %c0_i32 = arith.constant 0 : i32
    %c0_i32_0 = arith.constant 0 : i32
    %c0_i32_1 = arith.constant 0 : i32
    return %c0_i32, %c0_i32_0 : i32, i32
  }
  func.func @transform_3(%arg0: i32) -> (i32, i32) {
    %c0_i32 = arith.constant 0 : i32
    %c0_i32_0 = arith.constant 0 : i32
    return %arg0, %c0_i32 : i32, i32
  }
}

</mosaic_0001>

<llo_original>
// kernel: tpu_custom_call.1
$region0: #{tpu_custom_call.1}
  #allocation0 [shape = 'u32[]', space=smem, size = 0x4, offset = 0x4, fixed_abs, tag = 'smem constant byte address 0x4 - core index']
  #allocation1 [shape = 'u32[144,128]{1,0:T(1,128)}', space=vmem, size = 0x12000, scoped, tag = 'internal scratch']
  %s0 = inlined_call_operand.vmem [shape: f32[240,77], index: 0, kind: input, shape index: {}]
  %s1 = inlined_call_operand.vmem [shape: f32[77,64], index: 1, kind: input, shape index: {}]
  %s2 = inlined_call_operand.vmem [shape: f32[1,64], index: 2, kind: input, shape index: {}]
  %s3 = inlined_call_operand.vmem [shape: f32[240,64], index: 3, kind: output, shape index: {}]
  %s4 = sld [smem:[#allocation0]]
  $region22: #{tpu_custom_call.1} parent=0
    _
  %s6 = ssub.s32 1, %s4
  %s7 = scalar_select 0, %s6, %s4
  // Predicated region
  $region2: #{tpu_custom_call.1} parent=0 // pred_check
    _
  $region3: #{tpu_custom_call.1} parent=0 // pred_check_branch
    %9 = sbr.rel (0) target = $region5
  $region4: #{tpu_custom_call.1} parent=0 // pred_region
    _
  $region5: #{tpu_custom_call.1} parent=0 // pred_fallthru
    _
  // Predicated region
  $region6: #{tpu_custom_call.1} parent=0 // pred_check
    _
  $region7: #{tpu_custom_call.1} parent=0 // pred_check_branch
    %11 = sbr.rel (0) target = $region9
  $region8: #{tpu_custom_call.1} parent=0 // pred_region
    _
  $region9: #{tpu_custom_call.1} parent=0 // pred_fallthru
    _
  // Predicated region
  $region10: #{tpu_custom_call.1} parent=0 // pred_check
    _
  $region11: #{tpu_custom_call.1} parent=0 // pred_check_branch
    %13 = sbr.rel (0) target = $region13
  $region12: #{tpu_custom_call.1} parent=0 // pred_region
    _
  $region13: #{tpu_custom_call.1} parent=0 // pred_fallthru
    _
  %v14 = vld [vmem:[%s0] sm:$0xff]
  %v15 = vld [vmem:[%s0 + $0x8] sm:$0xff]
  %v16 = vld [vmem:[%s0 + $0x10] sm:$0xff]
  %v17 = vld [vmem:[%s0 + $0x18] sm:$0xff]
  %v18 = vld [vmem:[%s0 + $0x20] sm:$0xff]
  %v19 = vld [vmem:[%s0 + $0x28] sm:$0xff]
  %v20 = vld [vmem:[%s0 + $0x30] sm:$0xff]
  %v21 = vld [vmem:[%s0 + $0x38] sm:$0xff]
  %v22 = vld [vmem:[%s0 + $0x40] sm:$0xff]
  %v23 = vld [vmem:[%s0 + $0x48] sm:$0xff]
  %v24 = vld [vmem:[%s0 + $0x50] sm:$0xff]
  %v25 = vld [vmem:[%s0 + $0x58] sm:$0xff]
  %v26 = vld [vmem:[%s0 + $0x60] sm:$0xff]
  %v27 = vld [vmem:[%s0 + $0x68] sm:$0xff]
  %v28 = vld [vmem:[%s0 + $0x70] sm:$0xff]
  %v29 = vld [vmem:[%s0 + $0x78] sm:$0xff]
  %v30 = vld [vmem:[%s0 + $0x80] sm:$0xff]
  %v31 = vld [vmem:[%s0 + $0x88] sm:$0xff]
  %v32 = vld [vmem:[%s0 + $0x90] sm:$0xff]
  %v33 = vld [vmem:[%s0 + $0x98] sm:$0xff]
  %v34 = vld [vmem:[%s0 + $0xa0] sm:$0xff]
  %v35 = vld [vmem:[%s0 + $0xa8] sm:$0xff]
  %v36 = vld [vmem:[%s0 + $0xb0] sm:$0xff]
  %v37 = vld [vmem:[%s0 + $0xb8] sm:$0xff]
  %v38 = vld [vmem:[%s0 + $0xc0] sm:$0xff]
  %v39 = vld [vmem:[%s0 + $0xc8] sm:$0xff]
  %v40 = vld [vmem:[%s0 + $0xd0] sm:$0xff]
  %v41 = vld [vmem:[%s0 + $0xd8] sm:$0xff]
  %v42 = vld [vmem:[%s0 + $0xe0] sm:$0xff]
  %v43 = vld [vmem:[%s0 + $0xe8] sm:$0xff]
  %v44 = vld [vmem:[%s1] sm:$0xff]
  %v45 = vld [vmem:[%s1 + $0x8] sm:$0xff]
  %v46 = vld [vmem:[%s1 + $0x10] sm:$0xff]
  %v47 = vld [vmem:[%s1 + $0x18] sm:$0xff]
  %v48 = vld [vmem:[%s1 + $0x20] sm:$0xff]
  %v49 = vld [vmem:[%s1 + $0x28] sm:$0xff]
  %v50 = vld [vmem:[%s1 + $0x30] sm:$0xff]
  %v51 = vld [vmem:[%s1 + $0x38] sm:$0xff]
  %v52 = vld [vmem:[%s1 + $0x40] sm:$0xff]
  %v53 = vld [vmem:[%s1 + $0x48] sm:$0x1f]
  %v54 = vld [vmem:[%s2] sm:$0x1]
  %v56 = vlaneseq
  %v57 = vshrl.u32 %v56, 7
  %v58 = vsub.s32 0, %v57
  %v59 = vrot.slane %v54, %v58
  %vm61 = vcmask 629760
  %v63 = vsel %vm61, %v14, 0
  %v66 = vsel %vm61, %v15, 0
  %v69 = vsel %vm61, %v16, 0
  %v72 = vsel %vm61, %v17, 0
  %v75 = vsel %vm61, %v18, 0
  %v78 = vsel %vm61, %v19, 0
  %v81 = vsel %vm61, %v20, 0
  %v84 = vsel %vm61, %v21, 0
  %v87 = vsel %vm61, %v22, 0
  %v90 = vsel %vm61, %v23, 0
  %v93 = vsel %vm61, %v24, 0
  %v96 = vsel %vm61, %v25, 0
  %v99 = vsel %vm61, %v26, 0
  %v102 = vsel %vm61, %v27, 0
  %v105 = vsel %vm61, %v28, 0
  %v108 = vsel %vm61, %v29, 0
  %v111 = vsel %vm61, %v30, 0
  %v114 = vsel %vm61, %v31, 0
  %v117 = vsel %vm61, %v32, 0
  %v120 = vsel %vm61, %v33, 0
  %v123 = vsel %vm61, %v34, 0
  %v126 = vsel %vm61, %v35, 0
  %v129 = vsel %vm61, %v36, 0
  %v132 = vsel %vm61, %v37, 0
  %v135 = vsel %vm61, %v38, 0
  %v138 = vsel %vm61, %v39, 0
  %v141 = vsel %vm61, %v40, 0
  %v144 = vsel %vm61, %v41, 0
  %v147 = vsel %vm61, %v42, 0
  %v150 = vsel %vm61, %v43, 0
  %vm152 = vcmask 1044480
  %v154 = vsel %vm152, %v53, 0
  %156 = vmatprep.subr.mxu0 0.0
  %157 = vmatpush1.msra.mxu0 %v44
  %158 = vmatprep.subr.mxu0 0.0
  %159 = vmatpush1.msra.mxu0 %v45
  %160 = vmatprep.subr.mxu0 0.0
  %161 = vmatpush1.msra.mxu0 %v46
  %162 = vmatprep.subr.mxu0 0.0
  %163 = vmatpush1.msra.mxu0 %v47
  %164 = vmatprep.subr.mxu0 0.0
  %165 = vmatpush1.msra.mxu0 %v48
  %166 = vmatprep.subr.mxu0 0.0
  %167 = vmatpush1.msra.mxu0 %v49
  %168 = vmatprep.subr.mxu0 0.0
  %169 = vmatpush1.msra.mxu0 %v50
  %170 = vmatprep.subr.mxu0 0.0
  %171 = vmatpush1.msra.mxu0 %v51
  %172 = vmatprep.subr.mxu0 0.0
  %173 = vmatpush1.msra.mxu0 %v52
  %174 = vmatprep.subr.mxu0 0.0
  %175 = vmatpush1.msra.mxu0 %v154
  %176 = vmatprep.subr.mxu0 0.0
  %177 = vmatpush1.msra.mxu0 0.0
  %178 = vmatprep.subr.mxu0 0.0
  %179 = vmatpush1.msra.mxu0 0.0
  %180 = vmatprep.subr.mxu0 0.0
  %181 = vmatpush1.msra.mxu0 0.0
  %182 = vmatprep.subr.mxu0 0.0
  %183 = vmatpush1.msra.mxu0 0.0
  %184 = vmatprep.subr.mxu0 0.0
  %185 = vmatpush1.msra.mxu0 0.0
  %186 = vmatprep.subr.mxu0 0.0
  %187 = vmatpush1.msra.mxu0 0.0
  %188 = vmatprep.subr.mxu0 0.0
  %189 = vmatpush1.msra.mxu0 0.0
  %190 = vmatprep.subr.mxu0 0.0
  %191 = vmatpush1.msra.mxu0 0.0
  %192 = vmatprep.subr.mxu0 0.0
  %193 = vmatpush1.msra.mxu0 0.0
  %194 = vmatprep.subr.mxu0 0.0
  %195 = vmatpush1.msra.mxu0 0.0
  %196 = vmatprep.subr.mxu0 0.0
  %197 = vmatpush1.msra.mxu0 0.0
  %198 = vmatprep.subr.mxu0 0.0
  %199 = vmatpush1.msra.mxu0 0.0
  %200 = vmatprep.subr.mxu0 0.0
  %201 = vmatpush1.msra.mxu0 0.0
  %202 = vmatprep.subr.mxu0 0.0
  %203 = vmatpush1.msra.mxu0 0.0
  %204 = vmatprep.subr.mxu0 0.0
  %205 = vmatpush1.msra.mxu0 0.0
  %206 = vmatprep.subr.mxu0 0.0
  %207 = vmatpush1.msra.mxu0 0.0
  %208 = vmatprep.subr.mxu0 0.0
  %209 = vmatpush1.msra.mxu0 0.0
  %210 = vmatprep.subr.mxu0 0.0
  %211 = vmatpush1.msra.mxu0 0.0
  %212 = vmatprep.subr.mxu0 0.0
  %213 = vmatpush1.msra.mxu0 0.0
  %214 = vmatprep.subr.mxu0 0.0
  %215 = vmatpush1.msra.mxu0 0.0
  %216 = vmatprep.subr.mxu0 0.0
  %217 = vmatpush1.msra.mxu0 0.0
  %218 = vmatprep.subr.mxu0 0.0
  %219 = vmatpush1.msra.mxu0 0.0
  %220 = vmatprep.mubr.f32.mxu0 0.0
  %221 = vmatmul.mubr.f32.gmra.mrb[0].mxu0 %v63
  %v222 = vpop.f32.mrb[0].mxu0
  %v223 = vadd.f32 %v59, %v222
  %v224 = vpop.f32.mrb[0].mxu0
  %225 = vmatprep.mubr.f32.mxu0 0.0
  %226 = vmatmul.mubr.f32.gmra.mrb[0].mxu0 %v66
  %v227 = vpop.f32.mrb[0].mxu0
  %v228 = vadd.f32 %v59, %v227
  %v229 = vpop.f32.mrb[0].mxu0
  %230 = vmatprep.mubr.f32.mxu0 0.0
  %231 = vmatmul.mubr.f32.gmra.mrb[0].mxu0 %v69
  %v232 = vpop.f32.mrb[0].mxu0
  %v233 = vadd.f32 %v59, %v232
  %v234 = vpop.f32.mrb[0].mxu0
  %235 = vmatprep.mubr.f32.mxu0 0.0
  %236 = vmatmul.mubr.f32.gmra.mrb[0].mxu0 %v72
  %v237 = vpop.f32.mrb[0].mxu0
  %v238 = vadd.f32 %v59, %v237
  %v239 = vpop.f32.mrb[0].mxu0
  %240 = vmatprep.mubr.f32.mxu0 0.0
  %241 = vmatmul.mubr.f32.gmra.mrb[0].mxu0 %v75
  %v242 = vpop.f32.mrb[0].mxu0
  %v243 = vadd.f32 %v59, %v242
  %v244 = vpop.f32.mrb[0].mxu0
  %245 = vmatprep.mubr.f32.mxu0 0.0
  %246 = vmatmul.mubr.f32.gmra.mrb[0].mxu0 %v78
  %v247 = vpop.f32.mrb[0].mxu0
  %v248 = vadd.f32 %v59, %v247
  %v249 = vpop.f32.mrb[0].mxu0
  %250 = vmatprep.mubr.f32.mxu0 0.0
  %251 = vmatmul.mubr.f32.gmra.mrb[0].mxu0 %v81
  %v252 = vpop.f32.mrb[0].mxu0
  %v253 = vadd.f32 %v59, %v252
  %v254 = vpop.f32.mrb[0].mxu0
  %255 = vmatprep.mubr.f32.mxu0 0.0
  %256 = vmatmul.mubr.f32.gmra.mrb[0].mxu0 %v84
  %v257 = vpop.f32.mrb[0].mxu0
  %v258 = vadd.f32 %v59, %v257
  %v259 = vpop.f32.mrb[0].mxu0
  %260 = vmatprep.mubr.f32.mxu0 0.0
  %261 = vmatmul.mubr.f32.gmra.mrb[0].mxu0 %v87
  %v262 = vpop.f32.mrb[0].mxu0
  %v263 = vadd.f32 %v59, %v262
  %v264 = vpop.f32.mrb[0].mxu0
  %265 = vmatprep.mubr.f32.mxu0 0.0
  %266 = vmatmul.mubr.f32.gmra.mrb[0].mxu0 %v90
  %v267 = vpop.f32.mrb[0].mxu0
  %v268 = vadd.f32 %v59, %v267
  %v269 = vpop.f32.mrb[0].mxu0
  %270 = vmatprep.mubr.f32.mxu0 0.0
  %271 = vmatmul.mubr.f32.gmra.mrb[0].mxu0 %v93
  %v272 = vpop.f32.mrb[0].mxu0
  %v273 = vadd.f32 %v59, %v272
  %v274 = vpop.f32.mrb[0].mxu0
  %275 = vmatprep.mubr.f32.mxu0 0.0
  %276 = vmatmul.mubr.f32.gmra.mrb[0].mxu0 %v96
  %v277 = vpop.f32.mrb[0].mxu0
  %v278 = vadd.f32 %v59, %v277
  %v279 = vpop.f32.mrb[0].mxu0
  %280 = vmatprep.mubr.f32.mxu0 0.0
  %281 = vmatmul.mubr.f32.gmra.mrb[0].mxu0 %v99
  %v282 = vpop.f32.mrb[0].mxu0
  %v283 = vadd.f32 %v59, %v282
  %v284 = vpop.f32.mrb[0].mxu0
  %285 = vmatprep.mubr.f32.mxu0 0.0
  %286 = vmatmul.mubr.f32.gmra.mrb[0].mxu0 %v102
  %v287 = vpop.f32.mrb[0].mxu0
  %v288 = vadd.f32 %v59, %v287
  %v289 = vpop.f32.mrb[0].mxu0
  %290 = vmatprep.mubr.f32.mxu0 0.0
  %291 = vmatmul.mubr.f32.gmra.mrb[0].mxu0 %v105
  %v292 = vpop.f32.mrb[0].mxu0
  %v293 = vadd.f32 %v59, %v292
  %v294 = vpop.f32.mrb[0].mxu0
  %295 = vmatprep.mubr.f32.mxu0 0.0
  %296 = vmatmul.mubr.f32.gmra.mrb[0].mxu0 %v108
  %v297 = vpop.f32.mrb[0].mxu0
  %v298 = vadd.f32 %v59, %v297
  %v299 = vpop.f32.mrb[0].mxu0
  %300 = vmatprep.mubr.f32.mxu0 0.0
  %301 = vmatmul.mubr.f32.gmra.mrb[0].mxu0 %v111
  %v302 = vpop.f32.mrb[0].mxu0
  %v303 = vadd.f32 %v59, %v302
  %v304 = vpop.f32.mrb[0].mxu0
  %305 = vmatprep.mubr.f32.mxu0 0.0
  %306 = vmatmul.mubr.f32.gmra.mrb[0].mxu0 %v114
  %v307 = vpop.f32.mrb[0].mxu0
  %v308 = vadd.f32 %v59, %v307
  %v309 = vpop.f32.mrb[0].mxu0
  %310 = vmatprep.mubr.f32.mxu0 0.0
  %311 = vmatmul.mubr.f32.gmra.mrb[0].mxu0 %v117
  %v312 = vpop.f32.mrb[0].mxu0
  %v313 = vadd.f32 %v59, %v312
  %v314 = vpop.f32.mrb[0].mxu0
  %315 = vmatprep.mubr.f32.mxu0 0.0
  %316 = vmatmul.mubr.f32.gmra.mrb[0].mxu0 %v120
  %v317 = vpop.f32.mrb[0].mxu0
  %v318 = vadd.f32 %v59, %v317
  %v319 = vpop.f32.mrb[0].mxu0
  %320 = vmatprep.mubr.f32.mxu0 0.0
  %321 = vmatmul.mubr.f32.gmra.mrb[0].mxu0 %v123
  %v322 = vpop.f32.mrb[0].mxu0
  %v323 = vadd.f32 %v59, %v322
  %v324 = vpop.f32.mrb[0].mxu0
  %325 = vmatprep.mubr.f32.mxu0 0.0
  %326 = vmatmul.mubr.f32.gmra.mrb[0].mxu0 %v126
  %v327 = vpop.f32.mrb[0].mxu0
  %v328 = vadd.f32 %v59, %v327
  %v329 = vpop.f32.mrb[0].mxu0
  %330 = vmatprep.mubr.f32.mxu0 0.0
  %331 = vmatmul.mubr.f32.gmra.mrb[0].mxu0 %v129
  %v332 = vpop.f32.mrb[0].mxu0
  %v333 = vadd.f32 %v59, %v332
  %v334 = vpop.f32.mrb[0].mxu0
  %335 = vmatprep.mubr.f32.mxu0 0.0
  %336 = vmatmul.mubr.f32.gmra.mrb[0].mxu0 %v132
  %v337 = vpop.f32.mrb[0].mxu0
  %v338 = vadd.f32 %v59, %v337
  %v339 = vpop.f32.mrb[0].mxu0
  %340 = vmatprep.mubr.f32.mxu0 0.0
  %341 = vmatmul.mubr.f32.gmra.mrb[0].mxu0 %v135
  %v342 = vpop.f32.mrb[0].mxu0
  %v343 = vadd.f32 %v59, %v342
  %v344 = vpop.f32.mrb[0].mxu0
  %345 = vmatprep.mubr.f32.mxu0 0.0
  %346 = vmatmul.mubr.f32.gmra.mrb[0].mxu0 %v138
  %v347 = vpop.f32.mrb[0].mxu0
  %v348 = vadd.f32 %v59, %v347
  %v349 = vpop.f32.mrb[0].mxu0
  %350 = vmatprep.mubr.f32.mxu0 0.0
  %351 = vmatmul.mubr.f32.gmra.mrb[0].mxu0 %v141
  %v352 = vpop.f32.mrb[0].mxu0
  %v353 = vadd.f32 %v59, %v352
  %v354 = vpop.f32.mrb[0].mxu0
  %355 = vmatprep.mubr.f32.mxu0 0.0
  %356 = vmatmul.mubr.f32.gmra.mrb[0].mxu0 %v144
  %v357 = vpop.f32.mrb[0].mxu0
  %v358 = vadd.f32 %v59, %v357
  %v359 = vpop.f32.mrb[0].mxu0
  %360 = vmatprep.mubr.f32.mxu0 0.0
  %361 = vmatmul.mubr.f32.gmra.mrb[0].mxu0 %v147
  %v362 = vpop.f32.mrb[0].mxu0
  %v363 = vadd.f32 %v59, %v362
  %v364 = vpop.f32.mrb[0].mxu0
  %365 = vmatprep.mubr.f32.mxu0 0.0
  %366 = vmatmul.mubr.f32.gmra.mrb[0].mxu0 %v150
  %v367 = vpop.f32.mrb[0].mxu0
  %v368 = vadd.f32 %v59, %v367
  %v369 = vpop.f32.mrb[0].mxu0
  %370 = vdwg.mxu0
  %vm371 = vcmp.ge.f32.partialorder %v223, 0.0
  %vm372 = vcmp.ge.f32.partialorder %v228, 0.0
  %vm373 = vcmp.ge.f32.partialorder %v233, 0.0
  %vm374 = vcmp.ge.f32.partialorder %v238, 0.0
  %vm375 = vcmp.ge.f32.partialorder %v243, 0.0
  %vm376 = vcmp.ge.f32.partialorder %v248, 0.0
  %vm377 = vcmp.ge.f32.partialorder %v253, 0.0
  %vm378 = vcmp.ge.f32.partialorder %v258, 0.0
  %vm379 = vcmp.ge.f32.partialorder %v263, 0.0
  %vm380 = vcmp.ge.f32.partialorder %v268, 0.0
  %vm381 = vcmp.ge.f32.partialorder %v273, 0.0
  %vm382 = vcmp.ge.f32.partialorder %v278, 0.0
  %vm383 = vcmp.ge.f32.partialorder %v283, 0.0
  %vm384 = vcmp.ge.f32.partialorder %v288, 0.0
  %vm385 = vcmp.ge.f32.partialorder %v293, 0.0
  %vm386 = vcmp.ge.f32.partialorder %v298, 0.0
  %vm387 = vcmp.ge.f32.partialorder %v303, 0.0
  %vm388 = vcmp.ge.f32.partialorder %v308, 0.0
  %vm389 = vcmp.ge.f32.partialorder %v313, 0.0
  %vm390 = vcmp.ge.f32.partialorder %v318, 0.0
  %vm391 = vcmp.ge.f32.partialorder %v323, 0.0
  %vm392 = vcmp.ge.f32.partialorder %v328, 0.0
  %vm393 = vcmp.ge.f32.partialorder %v333, 0.0
  %vm394 = vcmp.ge.f32.partialorder %v338, 0.0
  %vm395 = vcmp.ge.f32.partialorder %v343, 0.0
  %vm396 = vcmp.ge.f32.partialorder %v348, 0.0
  %vm397 = vcmp.ge.f32.partialorder %v353, 0.0
  %vm398 = vcmp.ge.f32.partialorder %v358, 0.0
  %vm399 = vcmp.ge.f32.partialorder %v363, 0.0
  %vm400 = vcmp.ge.f32.partialorder %v368, 0.0
  %v401 = vmul.f32 %v223, 0.01
  %v402 = vmul.f32 %v228, 0.01
  %v403 = vmul.f32 %v233, 0.01
  %v404 = vmul.f32 %v238, 0.01
  %v405 = vmul.f32 %v243, 0.01
  %v406 = vmul.f32 %v248, 0.01
  %v407 = vmul.f32 %v253, 0.01
  %v408 = vmul.f32 %v258, 0.01
  %v409 = vmul.f32 %v263, 0.01
  %v410 = vmul.f32 %v268, 0.01
  %v411 = vmul.f32 %v273, 0.01
  %v412 = vmul.f32 %v278, 0.01
  %v413 = vmul.f32 %v283, 0.01
  %v414 = vmul.f32 %v288, 0.01
  %v415 = vmul.f32 %v293, 0.01
  %v416 = vmul.f32 %v298, 0.01
  %v417 = vmul.f32 %v303, 0.01
  %v418 = vmul.f32 %v308, 0.01
  %v419 = vmul.f32 %v313, 0.01
  %v420 = vmul.f32 %v318, 0.01
  %v421 = vmul.f32 %v323, 0.01
  %v422 = vmul.f32 %v328, 0.01
  %v423 = vmul.f32 %v333, 0.01
  %v424 = vmul.f32 %v338, 0.01
  %v425 = vmul.f32 %v343, 0.01
  %v426 = vmul.f32 %v348, 0.01
  %v427 = vmul.f32 %v353, 0.01
  %v428 = vmul.f32 %v358, 0.01
  %v429 = vmul.f32 %v363, 0.01
  %v430 = vmul.f32 %v368, 0.01
  %v431 = vsel %vm371, %v223, %v401
  %v432 = vsel %vm372, %v228, %v402
  %v433 = vsel %vm373, %v233, %v403
  %v434 = vsel %vm374, %v238, %v404
  %v435 = vsel %vm375, %v243, %v405
  %v436 = vsel %vm376, %v248, %v406
  %v437 = vsel %vm377, %v253, %v407
  %v438 = vsel %vm378, %v258, %v408
  %v439 = vsel %vm379, %v263, %v409
  %v440 = vsel %vm380, %v268, %v410
  %v441 = vsel %vm381, %v273, %v411
  %v442 = vsel %vm382, %v278, %v412
  %v443 = vsel %vm383, %v283, %v413
  %v444 = vsel %vm384, %v288, %v414
  %v445 = vsel %vm385, %v293, %v415
  %v446 = vsel %vm386, %v298, %v416
  %v447 = vsel %vm387, %v303, %v417
  %v448 = vsel %vm388, %v308, %v418
  %v449 = vsel %vm389, %v313, %v419
  %v450 = vsel %vm390, %v318, %v420
  %v451 = vsel %vm391, %v323, %v421
  %v452 = vsel %vm392, %v328, %v422
  %v453 = vsel %vm393, %v333, %v423
  %v454 = vsel %vm394, %v338, %v424
  %v455 = vsel %vm395, %v343, %v425
  %v456 = vsel %vm396, %v348, %v426
  %v457 = vsel %vm397, %v353, %v427
  %v458 = vsel %vm398, %v358, %v428
  %v459 = vsel %vm399, %v363, %v429
  %v460 = vsel %vm400, %v368, %v430
  %vm461 = vcmask 523264
  %462 = vst.msk [vmem:[%s3] sm:$0xff] %vm461, %v431
  %463 = vst.msk [vmem:[%s3 + $0x8] sm:$0xff] %vm461, %v432
  %464 = vst.msk [vmem:[%s3 + $0x10] sm:$0xff] %vm461, %v433
  %465 = vst.msk [vmem:[%s3 + $0x18] sm:$0xff] %vm461, %v434
  %466 = vst.msk [vmem:[%s3 + $0x20] sm:$0xff] %vm461, %v435
  %467 = vst.msk [vmem:[%s3 + $0x28] sm:$0xff] %vm461, %v436
  %468 = vst.msk [vmem:[%s3 + $0x30] sm:$0xff] %vm461, %v437
  %469 = vst.msk [vmem:[%s3 + $0x38] sm:$0xff] %vm461, %v438
  %470 = vst.msk [vmem:[%s3 + $0x40] sm:$0xff] %vm461, %v439
  %471 = vst.msk [vmem:[%s3 + $0x48] sm:$0xff] %vm461, %v440
  %472 = vst.msk [vmem:[%s3 + $0x50] sm:$0xff] %vm461, %v441
  %473 = vst.msk [vmem:[%s3 + $0x58] sm:$0xff] %vm461, %v442
  %474 = vst.msk [vmem:[%s3 + $0x60] sm:$0xff] %vm461, %v443
  %475 = vst.msk [vmem:[%s3 + $0x68] sm:$0xff] %vm461, %v444
  %476 = vst.msk [vmem:[%s3 + $0x70] sm:$0xff] %vm461, %v445
  %477 = vst.msk [vmem:[%s3 + $0x78] sm:$0xff] %vm461, %v446
  %478 = vst.msk [vmem:[%s3 + $0x80] sm:$0xff] %vm461, %v447
  %479 = vst.msk [vmem:[%s3 + $0x88] sm:$0xff] %vm461, %v448
  %480 = vst.msk [vmem:[%s3 + $0x90] sm:$0xff] %vm461, %v449
  %481 = vst.msk [vmem:[%s3 + $0x98] sm:$0xff] %vm461, %v450
  %482 = vst.msk [vmem:[%s3 + $0xa0] sm:$0xff] %vm461, %v451
  %483 = vst.msk [vmem:[%s3 + $0xa8] sm:$0xff] %vm461, %v452
  %484 = vst.msk [vmem:[%s3 + $0xb0] sm:$0xff] %vm461, %v453
  %485 = vst.msk [vmem:[%s3 + $0xb8] sm:$0xff] %vm461, %v454
  %486 = vst.msk [vmem:[%s3 + $0xc0] sm:$0xff] %vm461, %v455
  %487 = vst.msk [vmem:[%s3 + $0xc8] sm:$0xff] %vm461, %v456
  %488 = vst.msk [vmem:[%s3 + $0xd0] sm:$0xff] %vm461, %v457
  %489 = vst.msk [vmem:[%s3 + $0xd8] sm:$0xff] %vm461, %v458
  %490 = vst.msk [vmem:[%s3 + $0xe0] sm:$0xff] %vm461, %v459
  %491 = vst.msk [vmem:[%s3 + $0xe8] sm:$0xff] %vm461, %v460
  // Predicated region
  $region14: #{tpu_custom_call.1} parent=0 // pred_check
    _
  $region15: #{tpu_custom_call.1} parent=0 // pred_check_branch
    %493 = sbr.rel (0) target = $region17
  $region16: #{tpu_custom_call.1} parent=0 // pred_region
    _
  $region17: #{tpu_custom_call.1} parent=0 // pred_fallthru
    _
  // Predicated region
  $region18: #{tpu_custom_call.1} parent=0 // pred_check
    _
  $region19: #{tpu_custom_call.1} parent=0 // pred_check_branch
    %495 = sbr.rel (0) target = $region21
  $region20: #{tpu_custom_call.1} parent=0 // pred_region
    _
  $region21: #{tpu_custom_call.1} parent=0 // pred_fallthru
    _

</llo_original>
